<compile_context>
chip_gen: v6e
topology: v6e:2x2x1
jax: 0.10.0
libtpu: 0.0.40
codegen_flags: <defaults>
</compile_context>

<pallas_src>
import functools

import jax
import jax.numpy as jnp
from jax.experimental import pallas as pl
from jax.experimental.pallas import tpu as pltpu


def rnn_kernel(x_ref, u_ref, v_ref, bh_ref, w_ref, b_ref, z_ref, xu_ref):
    """One grid step: project a time-chunk of x into xu scratch.

    On the final grid step, additionally run the sequential recurrence over the
    fully-staged xu scratch and emit the final logits.

    x_ref : (CL, n, p)  time-major chunk of inputs (VMEM, auto-pipelined)
    u_ref : (p, H), v_ref : (H, H), bh_ref/w_ref : (1, H)  (VMEM, resident)
    b_ref : (1,) scalar bias in SMEM
    z_ref : (n, 1) output logits
    xu_ref: (l, n, H) VMEM scratch holding x@U + b_h, time-major
    """
    i = pl.program_id(0)
    cl, n, p = x_ref.shape
    H = v_ref.shape[0]
    l_total = xu_ref.shape[0]

    # ---- Input projection for this time-chunk: (CL*n, p) @ (p, H) + b_h ------
    x_chunk = x_ref[...].reshape(cl * n, p)          # collapse leading dims only
    xu = jnp.dot(x_chunk, u_ref[...], preferred_element_type=jnp.float32)
    xu = (xu + bh_ref[...]).reshape(cl, n, H)
    start = pl.multiple_of(i * cl, cl)
    xu_ref[pl.ds(start, cl)] = xu                    # one contiguous slab store

    # ---- Last grid step: sequential recurrence + final FC --------------------
    @pl.when(i == pl.num_programs(0) - 1)
    def _():
        v = v_ref[...]                               # (H, H) hoisted, 16 vregs

        def body(t, ht):
            zt = xu_ref[t] + jnp.dot(ht, v, preferred_element_type=jnp.float32)
            return jnp.tanh(zt)

        unroll = True if l_total <= 16 else 8        # bounded unroll for long l
        ht = jax.lax.fori_loop(0, l_total, body,
                               jnp.zeros((n, H), jnp.float32), unroll=unroll)

        # Final FC: z = h_l @ W + b as VPU multiply + lane reduction (no N=1 MXU)
        z = jnp.sum(ht * w_ref[...], axis=-1, keepdims=True) + b_ref[0]
        z_ref[...] = z                               # (n, 1)


def _pick_time_chunk(l, n):
    """Largest divisor of l giving ~<=4096 projection rows per chunk."""
    target = max(1, 4096 // max(n, 1))
    if l <= target:
        return l
    for c in range(min(target, l), 0, -1):
        if l % c == 0:
            return c
    return l


@jax.jit
def rnn_forward(x, U, V, b_h, W, b):
    """x: (n, l, p) f32; returns z: (n,) f32 — same semantics as RNN.forward."""
    n, l, p = x.shape
    h = U.shape[1]
    H = max(((h + 127) // 128) * 128, 128)           # lane-dense hidden dim

    # Zero-pad the hidden dimension; padded hidden lanes stay exactly zero
    # (zero rows/cols in V, zero b_h/W entries, tanh(0)=0).
    U_p = jnp.zeros((p, H), jnp.float32).at[:, :h].set(U.astype(jnp.float32))
    V_p = jnp.zeros((H, H), jnp.float32).at[:h, :h].set(V.astype(jnp.float32))
    bh_p = jnp.zeros((1, H), jnp.float32).at[0, :h].set(b_h.astype(jnp.float32))
    W_p = jnp.zeros((1, H), jnp.float32).at[0, :h].set(W.astype(jnp.float32))
    b_s = jnp.asarray(b, jnp.float32).reshape(1)

    # Time-major input so the kernel stages xu with one contiguous store per chunk.
    x_t = jnp.transpose(x.astype(jnp.float32), (1, 0, 2))   # (l, n, p)

    CL = _pick_time_chunk(l, n)
    num_chunks = l // CL

    # Scoped-VMEM budget: streamed x chunk (double-buffered) + weights + xu
    # scratch + transient xu value + output, with headroom.
    f32 = 4
    vmem_bytes = (2 * CL * n * p * f32          # x chunk, double-buffered
                  + p * H * f32 + H * H * f32   # U, V
                  + 2 * H * f32                 # b_h, W
                  + l * n * H * f32             # xu scratch
                  + CL * n * H * f32            # transient xu value
                  + n * f32                     # output
                  + (2 << 20))                  # headroom
    vmem_limit = min(128 << 20, max(32 << 20, int(1.5 * vmem_bytes)))

    z = pl.pallas_call(
        rnn_kernel,
        out_shape=jax.ShapeDtypeStruct((n, 1), jnp.float32),
        grid_spec=pltpu.PrefetchScalarGridSpec(
            num_scalar_prefetch=0,
            grid=(num_chunks,),
            in_specs=[
                pl.BlockSpec((CL, n, p), lambda i: (i, 0, 0)),   # x (time-major)
                pl.BlockSpec((p, H), lambda i: (0, 0)),          # U (resident)
                pl.BlockSpec((H, H), lambda i: (0, 0)),          # V (resident)
                pl.BlockSpec((1, H), lambda i: (0, 0)),          # b_h
                pl.BlockSpec((1, H), lambda i: (0, 0)),          # W
                pl.BlockSpec(memory_space=pltpu.MemorySpace.SMEM),  # b scalar
            ],
            out_specs=pl.BlockSpec((n, 1), lambda i: (0, 0)),
            scratch_shapes=[pltpu.VMEM((l, n, H), jnp.float32)],  # staged x@U+b_h
        ),
        compiler_params=pltpu.CompilerParams(
            dimension_semantics=("arbitrary",),
            vmem_limit_bytes=vmem_limit,
        ),
    )(x_t, U_p, V_p, bh_p, W_p, b_s)
    return z[:, 0]


def rnn_forward_ref(x, U, V, b_h, W, b):
    n, l, p = x.shape
    h = U.shape[1]
    ht = jnp.zeros((n, h), jnp.float32)
    for t in range(l):
        ht = jnp.tanh(x[:, t, :] @ U + ht @ V + b_h)
    return ht @ W + b


if __name__ == "__main__":
    # Small shapes consistent with the module's forward: x is (n, l, p)
    n, l, p, h = 8, 8, 16, 32

    key = jax.random.PRNGKey(0)
    kx, kU, kV, kW = jax.random.split(key, 4)

    x = jax.random.normal(kx, (n, l, p), dtype=jnp.float32)
    U = jax.random.normal(kU, (p, h), dtype=jnp.float32)
    V = jax.random.normal(kV, (h, h), dtype=jnp.float32)
    b_h = jnp.zeros((h,), dtype=jnp.float32)
    W = jax.random.normal(kW, (h,), dtype=jnp.float32)
    b = jnp.zeros((1,), dtype=jnp.float32)

    z = jax.block_until_ready(rnn_forward(x, U, V, b_h, W, b))
    z_ref = rnn_forward_ref(x, U, V, b_h, W, b)

    assert z.shape == (n,)
    assert jnp.allclose(z, z_ref, atol=1e-4, rtol=1e-4)

    print("KERNEL_OK")
</pallas_src>

<mosaic_0001>
module attributes {stable_mosaic.version = 11 : i64} {
  func.func @rnn_kernel(%arg0: i32, %arg1: memref<8x8x16xf32, #tpu.memory_space<vmem>>, %arg2: memref<16x128xf32, #tpu.memory_space<vmem>>, %arg3: memref<128x128xf32, #tpu.memory_space<vmem>>, %arg4: memref<1x128xf32, #tpu.memory_space<vmem>>, %arg5: memref<1x128xf32, #tpu.memory_space<vmem>>, %arg6: memref<1xf32, #tpu.memory_space<smem>>, %arg7: memref<8x1xf32, #tpu.memory_space<vmem>>, %arg8: memref<8x8x128xf32, #tpu.memory_space<vmem>>) attributes {dimension_semantics = [#tpu.dimension_semantics<arbitrary>], iteration_bounds = array<i64: 1>, scalar_prefetch = 0 : i64, scratch_operands = 1 : i64, tpu.core_type = #tpu.core_type<tc>, window_params = [{transform_indices = @transform_0, window_bounds = array<i64: 8, 8, 16>}, {pipeline_mode = #tpu.pipeline_mode<synchronous>, transform_indices = @transform_1, window_bounds = array<i64: 16, 128>}, {pipeline_mode = #tpu.pipeline_mode<synchronous>, transform_indices = @transform_2, window_bounds = array<i64: 128, 128>}, {pipeline_mode = #tpu.pipeline_mode<synchronous>, transform_indices = @transform_3, window_bounds = array<i64: 1, 128>}, {pipeline_mode = #tpu.pipeline_mode<synchronous>, transform_indices = @transform_4, window_bounds = array<i64: 1, 128>}, {transform_indices = @transform_5, window_bounds = array<i64: 1>}, {pipeline_mode = #tpu.pipeline_mode<synchronous>, transform_indices = @transform_6, window_bounds = array<i64: 8, 1>}]} {
    %c0 = arith.constant 0 : index
    %c0_0 = arith.constant 0 : index
    %c0_1 = arith.constant 0 : index
    %0 = vector.load %arg1[%c0, %c0_0, %c0_1] : memref<8x8x16xf32, #tpu.memory_space<vmem>>, vector<8x8x16xf32>
    %1 = vector.shape_cast %0 : vector<8x8x16xf32> to vector<64x16xf32>
    %c0_2 = arith.constant 0 : index
    %c0_3 = arith.constant 0 : index
    %2 = vector.load %arg2[%c0_2, %c0_3] : memref<16x128xf32, #tpu.memory_space<vmem>>, vector<16x128xf32>
    %cst = arith.constant dense<0.000000e+00> : vector<64x128xf32>
    %3 = tpu.matmul %1, %2, %cst {dimension_numbers = #tpu.dot_dimension_numbers<[1], [0], [0], [1], [0, 0, 1, 1], [], []>} : vector<64x16xf32>, vector<16x128xf32>, vector<64x128xf32> -> vector<64x128xf32>
    %c0_4 = arith.constant 0 : index
    %c0_5 = arith.constant 0 : index
    %4 = vector.load %arg4[%c0_4, %c0_5] : memref<1x128xf32, #tpu.memory_space<vmem>>, vector<1x128xf32>
    %5 = vector.broadcast %4 : vector<1x128xf32> to vector<64x128xf32>
    %6 = arith.addf %3, %5 : vector<64x128xf32>
    %7 = vector.shape_cast %6 : vector<64x128xf32> to vector<8x8x128xf32>
    %c8_i32 = arith.constant 8 : i32
    %8 = arith.muli %arg0, %c8_i32 : i32
    %9 = tpu.assume_multiple %8, 8 : i32
    %10 = arith.index_cast %9 : i32 to index
    %c0_6 = arith.constant 0 : index
    %c0_7 = arith.constant 0 : index
    %11 = vector.load %arg8[%10, %c0_6, %c0_7] : memref<8x8x128xf32, #tpu.memory_space<vmem>>, vector<8x8x128xf32>
    tpu.vector_store %arg8[%10, %c0_6, %c0_7], %7 {strides = array<i32>} : memref<8x8x128xf32, #tpu.memory_space<vmem>>, vector<8x8x128xf32>,
    %c0_i32 = arith.constant 0 : i32
    %12 = arith.cmpi eq, %arg0, %c0_i32 : i32
    %13 = arith.extui %12 : i1 to i32
    %c0_i32_8 = arith.constant 0 : i32
    %14 = arith.cmpi ne, %13, %c0_i32_8 : i32
    scf.if %14 {
      %c0_9 = arith.constant 0 : index
      %c0_10 = arith.constant 0 : index
      %15 = vector.load %arg3[%c0_9, %c0_10] : memref<128x128xf32, #tpu.memory_space<vmem>>, vector<128x128xf32>
      %cst_11 = arith.constant 0.000000e+00 : f32
      %16 = vector.broadcast %cst_11 : f32 to vector<8x128xf32>
      %c0_i32_12 = arith.constant 0 : i32
      %17 = arith.index_cast %c0_i32_12 : i32 to index
      %c0_13 = arith.constant 0 : index
      %c0_14 = arith.constant 0 : index
      %18 = vector.load %arg8[%17, %c0_13, %c0_14] : memref<8x8x128xf32, #tpu.memory_space<vmem>>, vector<1x8x128xf32>
      %19 = vector.shape_cast %18 : vector<1x8x128xf32> to vector<8x128xf32>
      %cst_15 = arith.constant dense<0.000000e+00> : vector<8x128xf32>
      %20 = tpu.matmul %16, %15, %cst_15 {dimension_numbers = #tpu.dot_dimension_numbers<[1], [0], [0], [1], [0, 0, 1, 1], [], []>} : vector<8x128xf32>, vector<128x128xf32>, vector<8x128xf32> -> vector<8x128xf32>
      %21 = arith.addf %19, %20 : vector<8x128xf32>
      %22 = math.tanh %21 : vector<8x128xf32>
      %c1_i32 = arith.constant 1 : i32
      %23 = arith.index_cast %c1_i32 : i32 to index
      %c0_16 = arith.constant 0 : index
      %c0_17 = arith.constant 0 : index
      %24 = vector.load %arg8[%23, %c0_16, %c0_17] : memref<8x8x128xf32, #tpu.memory_space<vmem>>, vector<1x8x128xf32>
      %25 = vector.shape_cast %24 : vector<1x8x128xf32> to vector<8x128xf32>
      %cst_18 = arith.constant dense<0.000000e+00> : vector<8x128xf32>
      %26 = tpu.matmul %22, %15, %cst_18 {dimension_numbers = #tpu.dot_dimension_numbers<[1], [0], [0], [1], [0, 0, 1, 1], [], []>} : vector<8x128xf32>, vector<128x128xf32>, vector<8x128xf32> -> vector<8x128xf32>
      %27 = arith.addf %25, %26 : vector<8x128xf32>
      %28 = math.tanh %27 : vector<8x128xf32>
      %c2_i32 = arith.constant 2 : i32
      %29 = arith.index_cast %c2_i32 : i32 to index
      %c0_19 = arith.constant 0 : index
      %c0_20 = arith.constant 0 : index
      %30 = vector.load %arg8[%29, %c0_19, %c0_20] : memref<8x8x128xf32, #tpu.memory_space<vmem>>, vector<1x8x128xf32>
      %31 = vector.shape_cast %30 : vector<1x8x128xf32> to vector<8x128xf32>
      %cst_21 = arith.constant dense<0.000000e+00> : vector<8x128xf32>
      %32 = tpu.matmul %28, %15, %cst_21 {dimension_numbers = #tpu.dot_dimension_numbers<[1], [0], [0], [1], [0, 0, 1, 1], [], []>} : vector<8x128xf32>, vector<128x128xf32>, vector<8x128xf32> -> vector<8x128xf32>
      %33 = arith.addf %31, %32 : vector<8x128xf32>
      %34 = math.tanh %33 : vector<8x128xf32>
      %c3_i32 = arith.constant 3 : i32
      %35 = arith.index_cast %c3_i32 : i32 to index
      %c0_22 = arith.constant 0 : index
      %c0_23 = arith.constant 0 : index
      %36 = vector.load %arg8[%35, %c0_22, %c0_23] : memref<8x8x128xf32, #tpu.memory_space<vmem>>, vector<1x8x128xf32>
      %37 = vector.shape_cast %36 : vector<1x8x128xf32> to vector<8x128xf32>
      %cst_24 = arith.constant dense<0.000000e+00> : vector<8x128xf32>
      %38 = tpu.matmul %34, %15, %cst_24 {dimension_numbers = #tpu.dot_dimension_numbers<[1], [0], [0], [1], [0, 0, 1, 1], [], []>} : vector<8x128xf32>, vector<128x128xf32>, vector<8x128xf32> -> vector<8x128xf32>
      %39 = arith.addf %37, %38 : vector<8x128xf32>
      %40 = math.tanh %39 : vector<8x128xf32>
      %c4_i32 = arith.constant 4 : i32
      %41 = arith.index_cast %c4_i32 : i32 to index
      %c0_25 = arith.constant 0 : index
      %c0_26 = arith.constant 0 : index
      %42 = vector.load %arg8[%41, %c0_25, %c0_26] : memref<8x8x128xf32, #tpu.memory_space<vmem>>, vector<1x8x128xf32>
      %43 = vector.shape_cast %42 : vector<1x8x128xf32> to vector<8x128xf32>
      %cst_27 = arith.constant dense<0.000000e+00> : vector<8x128xf32>
      %44 = tpu.matmul %40, %15, %cst_27 {dimension_numbers = #tpu.dot_dimension_numbers<[1], [0], [0], [1], [0, 0, 1, 1], [], []>} : vector<8x128xf32>, vector<128x128xf32>, vector<8x128xf32> -> vector<8x128xf32>
      %45 = arith.addf %43, %44 : vector<8x128xf32>
      %46 = math.tanh %45 : vector<8x128xf32>
      %c5_i32 = arith.constant 5 : i32
      %47 = arith.index_cast %c5_i32 : i32 to index
      %c0_28 = arith.constant 0 : index
      %c0_29 = arith.constant 0 : index
      %48 = vector.load %arg8[%47, %c0_28, %c0_29] : memref<8x8x128xf32, #tpu.memory_space<vmem>>, vector<1x8x128xf32>
      %49 = vector.shape_cast %48 : vector<1x8x128xf32> to vector<8x128xf32>
      %cst_30 = arith.constant dense<0.000000e+00> : vector<8x128xf32>
      %50 = tpu.matmul %46, %15, %cst_30 {dimension_numbers = #tpu.dot_dimension_numbers<[1], [0], [0], [1], [0, 0, 1, 1], [], []>} : vector<8x128xf32>, vector<128x128xf32>, vector<8x128xf32> -> vector<8x128xf32>
      %51 = arith.addf %49, %50 : vector<8x128xf32>
      %52 = math.tanh %51 : vector<8x128xf32>
      %c6_i32 = arith.constant 6 : i32
      %53 = arith.index_cast %c6_i32 : i32 to index
      %c0_31 = arith.constant 0 : index
      %c0_32 = arith.constant 0 : index
      %54 = vector.load %arg8[%53, %c0_31, %c0_32] : memref<8x8x128xf32, #tpu.memory_space<vmem>>, vector<1x8x128xf32>
      %55 = vector.shape_cast %54 : vector<1x8x128xf32> to vector<8x128xf32>
      %cst_33 = arith.constant dense<0.000000e+00> : vector<8x128xf32>
      %56 = tpu.matmul %52, %15, %cst_33 {dimension_numbers = #tpu.dot_dimension_numbers<[1], [0], [0], [1], [0, 0, 1, 1], [], []>} : vector<8x128xf32>, vector<128x128xf32>, vector<8x128xf32> -> vector<8x128xf32>
      %57 = arith.addf %55, %56 : vector<8x128xf32>
      %58 = math.tanh %57 : vector<8x128xf32>
      %c7_i32 = arith.constant 7 : i32
      %59 = arith.index_cast %c7_i32 : i32 to index
      %c0_34 = arith.constant 0 : index
      %c0_35 = arith.constant 0 : index
      %60 = vector.load %arg8[%59, %c0_34, %c0_35] : memref<8x8x128xf32, #tpu.memory_space<vmem>>, vector<1x8x128xf32>
      %61 = vector.shape_cast %60 : vector<1x8x128xf32> to vector<8x128xf32>
      %cst_36 = arith.constant dense<0.000000e+00> : vector<8x128xf32>
      %62 = tpu.matmul %58, %15, %cst_36 {dimension_numbers = #tpu.dot_dimension_numbers<[1], [0], [0], [1], [0, 0, 1, 1], [], []>} : vector<8x128xf32>, vector<128x128xf32>, vector<8x128xf32> -> vector<8x128xf32>
      %63 = arith.addf %61, %62 : vector<8x128xf32>
      %64 = math.tanh %63 : vector<8x128xf32>
      %c8_i32_37 = arith.constant 8 : i32
      %c0_38 = arith.constant 0 : index
      %c0_39 = arith.constant 0 : index
      %65 = vector.load %arg5[%c0_38, %c0_39] : memref<1x128xf32, #tpu.memory_space<vmem>>, vector<1x128xf32>
      %66 = vector.broadcast %65 : vector<1x128xf32> to vector<8x128xf32>
      %67 = arith.mulf %64, %66 : vector<8x128xf32>
      %cst_40 = arith.constant dense<0.000000e+00> : vector<8xf32>
      %68 = vector.multi_reduction <add>, %67, %cst_40 [1] : vector<8x128xf32> to vector<8xf32>
      %69 = vector.shape_cast %68 : vector<8xf32> to vector<8x1xf32>
      %c0_41 = arith.constant 0 : index
      %70 = memref.load %arg6[%c0_41] : memref<1xf32, #tpu.memory_space<smem>>
      %71 = vector.broadcast %70 : f32 to vector<8x1xf32>
      %72 = arith.addf %69, %71 : vector<8x1xf32>
      %c0_42 = arith.constant 0 : index
      %c0_43 = arith.constant 0 : index
      %73 = vector.load %arg7[%c0_42, %c0_43] : memref<8x1xf32, #tpu.memory_space<vmem>>, vector<8x1xf32>
      tpu.vector_store %arg7[%c0_42, %c0_43], %72 {strides = array<i32>} : memref<8x1xf32, #tpu.memory_space<vmem>>, vector<8x1xf32>,
    } else {
    }
    return
  }
  func.func @transform_0(%arg0: i32) -> (i32, i32, i32) {
    %c0_i32 = arith.constant 0 : i32
    %c0_i32_0 = arith.constant 0 : i32
    %c0_i32_1 = arith.constant 0 : i32
    return %arg0, %c0_i32, %c0_i32_0 : i32, i32, i32
  }
  func.func @transform_1(%arg0: i32) -> (i32, i32) {
    %c0_i32 = arith.constant 0 : i32
    %c0_i32_0 = arith.constant 0 : i32
    %c0_i32_1 = arith.constant 0 : i32
    return %c0_i32, %c0_i32_0 : i32, i32
  }
  func.func @transform_2(%arg0: i32) -> (i32, i32) {
    %c0_i32 = arith.constant 0 : i32
    %c0_i32_0 = arith.constant 0 : i32
    %c0_i32_1 = arith.constant 0 : i32
    return %c0_i32, %c0_i32_0 : i32, i32
  }
  func.func @transform_3(%arg0: i32) -> (i32, i32) {
    %c0_i32 = arith.constant 0 : i32
    %c0_i32_0 = arith.constant 0 : i32
    %c0_i32_1 = arith.constant 0 : i32
    return %c0_i32, %c0_i32_0 : i32, i32
  }
  func.func @transform_4(%arg0: i32) -> (i32, i32) {
    %c0_i32 = arith.constant 0 : i32
    %c0_i32_0 = arith.constant 0 : i32
    %c0_i32_1 = arith.constant 0 : i32
    return %c0_i32, %c0_i32_0 : i32, i32
  }
  func.func @transform_5(%arg0: i32) -> i32 {
    %c0_i32 = arith.constant 0 : i32
    %c0_i32_0 = arith.constant 0 : i32
    return %c0_i32 : i32
  }
  func.func @transform_6(%arg0: i32) -> (i32, i32) {
    %c0_i32 = arith.constant 0 : i32
    %c0_i32_0 = arith.constant 0 : i32
    %c0_i32_1 = arith.constant 0 : i32
    return %c0_i32, %c0_i32_0 : i32, i32
  }
}

</mosaic_0001>

<llo_original>
// kernel: rnn_forward.1
$region0: #{rnn_forward.1}
  #allocation0 [shape = 'u32[]', space=smem, size = 0x4, offset = 0x4, fixed_abs, tag = 'smem constant byte address 0x4 - core index']
  #allocation1 [shape = 'u32[144,128]{1,0:T(1,128)}', space=vmem, size = 0x12000, scoped, tag = 'internal scratch']
  #allocation2 [shape = 'f32[8,8,128]{2,1,0:T(8,128)}', space=vmem, size = 0x8000, scoped, tag = 'scratch operand']
  #allocation3 [shape = 'f32[1]{0:T(128)S(6)}', space=smem, size = 0x200, scoped, tag = 'scoped memory for rnn_forward.1']
  %s0 = inlined_call_operand.vmem [shape: f32[8,8,16], index: 0, kind: input, shape index: {}]
  %s1 = inlined_call_operand.vmem [shape: f32[16,128], index: 1, kind: input, shape index: {}]
  %s2 = inlined_call_operand.vmem [shape: f32[128,128], index: 2, kind: input, shape index: {}]
  %s3 = inlined_call_operand.vmem [shape: f32[1,128], index: 3, kind: input, shape index: {}]
  %s4 = inlined_call_operand.vmem [shape: f32[1,128], index: 4, kind: input, shape index: {}]
  %s5 = inlined_call_operand.<no memory space> [shape: f32[1], index: 5, kind: input, shape index: {}]
  %s6 = inlined_call_operand.vmem [shape: f32[8,1], index: 6, kind: output, shape index: {}]
  %s7 = sld [smem:[#allocation0]]
  $region38: #{rnn_forward.1} parent=0
    _
  %s9 = ssub.s32 1, %s7
  %s10 = scalar_select 0, %s9, %s7
  %11 = sst [smem:[#allocation3]] %s5
  // Predicated region
  $region2: #{rnn_forward.1} parent=0 // pred_check
    _
  $region3: #{rnn_forward.1} parent=0 // pred_check_branch
    %13 = sbr.rel (0) target = $region5
  $region4: #{rnn_forward.1} parent=0 // pred_region
    _
  $region5: #{rnn_forward.1} parent=0 // pred_fallthru
    _
  // Predicated region
  $region6: #{rnn_forward.1} parent=0 // pred_check
    _
  $region7: #{rnn_forward.1} parent=0 // pred_check_branch
    %15 = sbr.rel (0) target = $region9
  $region8: #{rnn_forward.1} parent=0 // pred_region
    _
  $region9: #{rnn_forward.1} parent=0 // pred_fallthru
    _
  // Predicated region
  $region10: #{rnn_forward.1} parent=0 // pred_check
    _
  $region11: #{rnn_forward.1} parent=0 // pred_check_branch
    %17 = sbr.rel (0) target = $region13
  $region12: #{rnn_forward.1} parent=0 // pred_region
    _
  $region13: #{rnn_forward.1} parent=0 // pred_fallthru
    _
  // Predicated region
  $region14: #{rnn_forward.1} parent=0 // pred_check
    _
  $region15: #{rnn_forward.1} parent=0 // pred_check_branch
    %19 = sbr.rel (0) target = $region17
  $region16: #{rnn_forward.1} parent=0 // pred_region
    _
  $region17: #{rnn_forward.1} parent=0 // pred_fallthru
    _
  // Predicated region
  $region18: #{rnn_forward.1} parent=0 // pred_check
    _
  $region19: #{rnn_forward.1} parent=0 // pred_check_branch
    %21 = sbr.rel (0) target = $region21
  $region20: #{rnn_forward.1} parent=0 // pred_region
    _
  $region21: #{rnn_forward.1} parent=0 // pred_fallthru
    _
  // Predicated region
  $region22: #{rnn_forward.1} parent=0 // pred_check
    _
  $region23: #{rnn_forward.1} parent=0 // pred_check_branch
    %23 = sbr.rel (0) target = $region25
  $region24: #{rnn_forward.1} parent=0 // pred_region
    _
  $region25: #{rnn_forward.1} parent=0 // pred_fallthru
    _
  %v24 = vld [vmem:[%s0] sm:$0xff]
  %v25 = vld [vmem:[%s0 + $0x8] sm:$0xff]
  %v26 = vld [vmem:[%s0 + $0x10] sm:$0xff]
  %v27 = vld [vmem:[%s0 + $0x18] sm:$0xff]
  %v28 = vld [vmem:[%s0 + $0x20] sm:$0xff]
  %v29 = vld [vmem:[%s0 + $0x28] sm:$0xff]
  %v30 = vld [vmem:[%s0 + $0x30] sm:$0xff]
  %v31 = vld [vmem:[%s0 + $0x38] sm:$0xff]
  %v32 = vld [vmem:[%s1] sm:$0xff]
  %v33 = vld [vmem:[%s1 + $0x8] sm:$0xff]
  %v34 = vld [vmem:[%s3] sm:$0x1]
  %v36 = vlaneseq
  %v37 = vshrl.u32 %v36, 7
  %v38 = vsub.s32 0, %v37
  %v39 = vrot.slane %v34, %v38
  %vm41 = vcmask 130048
  %v43 = vsel %vm41, %v24, 0
  %v46 = vsel %vm41, %v25, 0
  %v49 = vsel %vm41, %v26, 0
  %v52 = vsel %vm41, %v27, 0
  %v55 = vsel %vm41, %v28, 0
  %v58 = vsel %vm41, %v29, 0
  %v61 = vsel %vm41, %v30, 0
  %v64 = vsel %vm41, %v31, 0
  %66 = vmatprep.subr.mxu0 0.0
  %67 = vmatpush1.msra.mxu0 0.0
  %68 = vmatprep.subr.mxu0 0.0
  %69 = vmatpush1.msra.mxu0 0.0
  %70 = vmatprep.subr.mxu0 0.0
  %71 = vmatpush1.msra.mxu0 0.0
  %72 = vmatprep.subr.mxu0 0.0
  %73 = vmatpush1.msra.mxu0 0.0
  %74 = vmatprep.subr.mxu0 0.0
  %75 = vmatpush1.msra.mxu0 0.0
  %76 = vmatprep.subr.mxu0 0.0
  %77 = vmatpush1.msra.mxu0 0.0
  %78 = vmatprep.subr.mxu0 0.0
  %79 = vmatpush1.msra.mxu0 0.0
  %80 = vmatprep.subr.mxu0 0.0
  %81 = vmatpush1.msra.mxu0 0.0
  %82 = vmatprep.subr.mxu0 0.0
  %83 = vmatpush1.msra.mxu0 0.0
  %84 = vmatprep.subr.mxu0 0.0
  %85 = vmatpush1.msra.mxu0 0.0
  %86 = vmatprep.subr.mxu0 0.0
  %87 = vmatpush1.msra.mxu0 0.0
  %88 = vmatprep.subr.mxu0 0.0
  %89 = vmatpush1.msra.mxu0 0.0
  %90 = vmatprep.subr.mxu0 0.0
  %91 = vmatpush1.msra.mxu0 0.0
  %92 = vmatprep.subr.mxu0 0.0
  %93 = vmatpush1.msra.mxu0 0.0
  %94 = vmatprep.subr.mxu0 0.0
  %95 = vmatpush1.msra.mxu0 %v33
  %96 = vmatprep.subr.mxu0 0.0
  %97 = vmatpush1.msra.mxu0 %v32
  %98 = vmatprep.subr.mxu0 0.0
  %99 = vmatpush2.msra.mxu0 0.0
  %100 = vmatprep.subr.mxu0 0.0
  %101 = vmatpush2.msra.mxu0 0.0
  %102 = vmatprep.subr.mxu0 0.0
  %103 = vmatpush2.msra.mxu0 0.0
  %104 = vmatprep.subr.mxu0 0.0
  %105 = vmatpush2.msra.mxu0 0.0
  %106 = vmatprep.subr.mxu0 0.0
  %107 = vmatpush2.msra.mxu0 0.0
  %108 = vmatprep.subr.mxu0 0.0
  %109 = vmatpush2.msra.mxu0 0.0
  %110 = vmatprep.subr.mxu0 0.0
  %111 = vmatpush2.msra.mxu0 0.0
  %112 = vmatprep.subr.mxu0 0.0
  %113 = vmatpush2.msra.mxu0 0.0
  %114 = vmatprep.subr.mxu0 0.0
  %115 = vmatpush2.msra.mxu0 0.0
  %116 = vmatprep.subr.mxu0 0.0
  %117 = vmatpush2.msra.mxu0 0.0
  %118 = vmatprep.subr.mxu0 0.0
  %119 = vmatpush2.msra.mxu0 0.0
  %120 = vmatprep.subr.mxu0 0.0
  %121 = vmatpush2.msra.mxu0 0.0
  %122 = vmatprep.subr.mxu0 0.0
  %123 = vmatpush2.msra.mxu0 0.0
  %124 = vmatprep.subr.mxu0 0.0
  %125 = vmatpush2.msra.mxu0 0.0
  %126 = vmatprep.subr.mxu0 0.0
  %127 = vmatpush2.msra.mxu0 0.0
  %128 = vmatprep.subr.mxu0 0.0
  %129 = vmatpush2.msra.mxu0 0.0
  %130 = vmatprep.mubr.f32.mxu0 0.0
  %131 = vmatmul.mubr.f32.gmra.mxu0 %v43
  %v132 = vpop.f32.mrf.mxu0
  %v133 = vadd.f32 %v39, %v132
  %v134 = vpop.f32.mrf.mxu0
  %135 = vmatprep.mubr.f32.mxu0 0.0
  %136 = vmatmul.mubr.f32.gmra.mxu0 %v46
  %v137 = vpop.f32.mrf.mxu0
  %v138 = vadd.f32 %v39, %v137
  %v139 = vpop.f32.mrf.mxu0
  %140 = vmatprep.mubr.f32.mxu0 0.0
  %141 = vmatmul.mubr.f32.gmra.mxu0 %v49
  %v142 = vpop.f32.mrf.mxu0
  %v143 = vadd.f32 %v39, %v142
  %v144 = vpop.f32.mrf.mxu0
  %145 = vmatprep.mubr.f32.mxu0 0.0
  %146 = vmatmul.mubr.f32.gmra.mxu0 %v52
  %v147 = vpop.f32.mrf.mxu0
  %v148 = vadd.f32 %v39, %v147
  %v149 = vpop.f32.mrf.mxu0
  %150 = vmatprep.mubr.f32.mxu0 0.0
  %151 = vmatmul.mubr.f32.gmra.mxu0 %v55
  %v152 = vpop.f32.mrf.mxu0
  %v153 = vadd.f32 %v39, %v152
  %v154 = vpop.f32.mrf.mxu0
  %155 = vmatprep.mubr.f32.mxu0 0.0
  %156 = vmatmul.mubr.f32.gmra.mxu0 %v58
  %v157 = vpop.f32.mrf.mxu0
  %v158 = vadd.f32 %v39, %v157
  %v159 = vpop.f32.mrf.mxu0
  %160 = vmatprep.mubr.f32.mxu0 0.0
  %161 = vmatmul.mubr.f32.gmra.mxu0 %v61
  %v162 = vpop.f32.mrf.mxu0
  %v163 = vadd.f32 %v39, %v162
  %v164 = vpop.f32.mrf.mxu0
  %165 = vmatprep.mubr.f32.mxu0 0.0
  %166 = vmatmul.mubr.f32.gmra.mxu0 %v64
  %v167 = vpop.f32.mrf.mxu0
  %v168 = vadd.f32 %v39, %v167
  %v169 = vpop.f32.mrf.mxu0
  %170 = vdwg.mxu0
  %s171 = smul.u32 0, 8
  %s172 = smul.u32 %s171, 8
  %s173 = scalar_lea.vmem [#allocation2], %s172
  %174 = vst [vmem:[%s173] sm:$0xff] %v133
  %175 = vst [vmem:[%s173 + $0x8] sm:$0xff] %v138
  %176 = vst [vmem:[%s173 + $0x10] sm:$0xff] %v143
  %177 = vst [vmem:[%s173 + $0x18] sm:$0xff] %v148
  %178 = vst [vmem:[%s173 + $0x20] sm:$0xff] %v153
  %179 = vst [vmem:[%s173 + $0x28] sm:$0xff] %v158
  %180 = vst [vmem:[%s173 + $0x30] sm:$0xff] %v163
  %181 = vst [vmem:[%s173 + $0x38] sm:$0xff] %v168
  %p182 = scmp.eq.s32.totalorder 0, 0
  // Predicated region
  $region26: #{rnn_forward.1} parent=0 // pred_check
    %p183 = pneg %p182
  $region27: #{rnn_forward.1} parent=0 // pred_check_branch
    %185 = sbr.rel (%p183) target = $region29
  $region28: #{rnn_forward.1} parent=0 // pred_region
    %v186 = vld [vmem:[%s2] sm:$0xff]
    %v187 = vld [vmem:[%s2 + $0x8] sm:$0xff]
    %v188 = vld [vmem:[%s2 + $0x10] sm:$0xff]
    %v189 = vld [vmem:[%s2 + $0x18] sm:$0xff]
    %v190 = vld [vmem:[%s2 + $0x20] sm:$0xff]
    %v191 = vld [vmem:[%s2 + $0x28] sm:$0xff]
    %v192 = vld [vmem:[%s2 + $0x30] sm:$0xff]
    %v193 = vld [vmem:[%s2 + $0x38] sm:$0xff]
    %v194 = vld [vmem:[%s2 + $0x40] sm:$0xff]
    %v195 = vld [vmem:[%s2 + $0x48] sm:$0xff]
    %v196 = vld [vmem:[%s2 + $0x50] sm:$0xff]
    %v197 = vld [vmem:[%s2 + $0x58] sm:$0xff]
    %v198 = vld [vmem:[%s2 + $0x60] sm:$0xff]
    %v199 = vld [vmem:[%s2 + $0x68] sm:$0xff]
    %v200 = vld [vmem:[%s2 + $0x70] sm:$0xff]
    %v201 = vld [vmem:[%s2 + $0x78] sm:$0xff]
    %v202 = vld [vmem:[#allocation2] sm:$0xff]
    %203 = vmatprep.subr.mxu0 0.0
    %204 = vmatpush1.msra.mxu0 %v201
    %205 = vmatprep.subr.mxu0 0.0
    %206 = vmatpush1.msra.mxu0 %v200
    %207 = vmatprep.subr.mxu0 0.0
    %208 = vmatpush1.msra.mxu0 %v199
    %209 = vmatprep.subr.mxu0 0.0
    %210 = vmatpush1.msra.mxu0 %v198
    %211 = vmatprep.subr.mxu0 0.0
    %212 = vmatpush1.msra.mxu0 %v197
    %213 = vmatprep.subr.mxu0 0.0
    %214 = vmatpush1.msra.mxu0 %v196
    %215 = vmatprep.subr.mxu0 0.0
    %216 = vmatpush1.msra.mxu0 %v195
    %217 = vmatprep.subr.mxu0 0.0
    %218 = vmatpush1.msra.mxu0 %v194
    %219 = vmatprep.subr.mxu0 0.0
    %220 = vmatpush1.msra.mxu0 %v193
    %221 = vmatprep.subr.mxu0 0.0
    %222 = vmatpush1.msra.mxu0 %v192
    %223 = vmatprep.subr.mxu0 0.0
    %224 = vmatpush1.msra.mxu0 %v191
    %225 = vmatprep.subr.mxu0 0.0
    %226 = vmatpush1.msra.mxu0 %v190
    %227 = vmatprep.subr.mxu0 0.0
    %228 = vmatpush1.msra.mxu0 %v189
    %229 = vmatprep.subr.mxu0 0.0
    %230 = vmatpush1.msra.mxu0 %v188
    %231 = vmatprep.subr.mxu0 0.0
    %232 = vmatpush1.msra.mxu0 %v187
    %233 = vmatprep.subr.mxu0 0.0
    %234 = vmatpush1.msra.mxu0 %v186
    %235 = vmatprep.subr.mxu0 0.0
    %236 = vmatpush2.msra.mxu0 0.0
    %237 = vmatprep.subr.mxu0 0.0
    %238 = vmatpush2.msra.mxu0 0.0
    %239 = vmatprep.subr.mxu0 0.0
    %240 = vmatpush2.msra.mxu0 0.0
    %241 = vmatprep.subr.mxu0 0.0
    %242 = vmatpush2.msra.mxu0 0.0
    %243 = vmatprep.subr.mxu0 0.0
    %244 = vmatpush2.msra.mxu0 0.0
    %245 = vmatprep.subr.mxu0 0.0
    %246 = vmatpush2.msra.mxu0 0.0
    %247 = vmatprep.subr.mxu0 0.0
    %248 = vmatpush2.msra.mxu0 0.0
    %249 = vmatprep.subr.mxu0 0.0
    %250 = vmatpush2.msra.mxu0 0.0
    %251 = vmatprep.subr.mxu0 0.0
    %252 = vmatpush2.msra.mxu0 0.0
    %253 = vmatprep.subr.mxu0 0.0
    %254 = vmatpush2.msra.mxu0 0.0
    %255 = vmatprep.subr.mxu0 0.0
    %256 = vmatpush2.msra.mxu0 0.0
    %257 = vmatprep.subr.mxu0 0.0
    %258 = vmatpush2.msra.mxu0 0.0
    %259 = vmatprep.subr.mxu0 0.0
    %260 = vmatpush2.msra.mxu0 0.0
    %261 = vmatprep.subr.mxu0 0.0
    %262 = vmatpush2.msra.mxu0 0.0
    %263 = vmatprep.subr.mxu0 0.0
    %264 = vmatpush2.msra.mxu0 0.0
    %265 = vmatprep.subr.mxu0 0.0
    %266 = vmatpush2.msra.mxu0 0.0
    %267 = vmatprep.mubr.f32.mxu0 0.0
    %268 = vmatmul.mubr.f32.gmra.mxu0 0.0
    %v269 = vpop.f32.mrf.mxu0
    %v270 = vadd.f32 0.0, %v269
    %v271 = vpop.f32.mrf.mxu0
    %272 = vdwg.mxu0
    %v273 = vadd.f32 %v202, %v270
    %v274 = vtanh.pop %v273
    %s275 = scalar_lea.vmem [#allocation2], 8
    %v276 = vld [vmem:[%s275] sm:$0xff]
    %277 = vmatprep.subr.mxu0 0.0
    %278 = vmatpush1.msra.mxu0 %v201
    %279 = vmatprep.subr.mxu0 0.0
    %280 = vmatpush1.msra.mxu0 %v200
    %281 = vmatprep.subr.mxu0 0.0
    %282 = vmatpush1.msra.mxu0 %v199
    %283 = vmatprep.subr.mxu0 0.0
    %284 = vmatpush1.msra.mxu0 %v198
    %285 = vmatprep.subr.mxu0 0.0
    %286 = vmatpush1.msra.mxu0 %v197
    %287 = vmatprep.subr.mxu0 0.0
    %288 = vmatpush1.msra.mxu0 %v196
    %289 = vmatprep.subr.mxu0 0.0
    %290 = vmatpush1.msra.mxu0 %v195
    %291 = vmatprep.subr.mxu0 0.0
    %292 = vmatpush1.msra.mxu0 %v194
    %293 = vmatprep.subr.mxu0 0.0
    %294 = vmatpush1.msra.mxu0 %v193
    %295 = vmatprep.subr.mxu0 0.0
    %296 = vmatpush1.msra.mxu0 %v192
    %297 = vmatprep.subr.mxu0 0.0
    %298 = vmatpush1.msra.mxu0 %v191
    %299 = vmatprep.subr.mxu0 0.0
    %300 = vmatpush1.msra.mxu0 %v190
    %301 = vmatprep.subr.mxu0 0.0
    %302 = vmatpush1.msra.mxu0 %v189
    %303 = vmatprep.subr.mxu0 0.0
    %304 = vmatpush1.msra.mxu0 %v188
    %305 = vmatprep.subr.mxu0 0.0
    %306 = vmatpush1.msra.mxu0 %v187
    %307 = vmatprep.subr.mxu0 0.0
    %308 = vmatpush1.msra.mxu0 %v186
    %309 = vmatprep.subr.mxu0 0.0
    %310 = vmatpush2.msra.mxu0 0.0
    %311 = vmatprep.subr.mxu0 0.0
    %312 = vmatpush2.msra.mxu0 0.0
    %313 = vmatprep.subr.mxu0 0.0
    %314 = vmatpush2.msra.mxu0 0.0
    %315 = vmatprep.subr.mxu0 0.0
    %316 = vmatpush2.msra.mxu0 0.0
    %317 = vmatprep.subr.mxu0 0.0
    %318 = vmatpush2.msra.mxu0 0.0
    %319 = vmatprep.subr.mxu0 0.0
    %320 = vmatpush2.msra.mxu0 0.0
    %321 = vmatprep.subr.mxu0 0.0
    %322 = vmatpush2.msra.mxu0 0.0
    %323 = vmatprep.subr.mxu0 0.0
    %324 = vmatpush2.msra.mxu0 0.0
    %325 = vmatprep.subr.mxu0 0.0
    %326 = vmatpush2.msra.mxu0 0.0
    %327 = vmatprep.subr.mxu0 0.0
    %328 = vmatpush2.msra.mxu0 0.0
    %329 = vmatprep.subr.mxu0 0.0
    %330 = vmatpush2.msra.mxu0 0.0
    %331 = vmatprep.subr.mxu0 0.0
    %332 = vmatpush2.msra.mxu0 0.0
    %333 = vmatprep.subr.mxu0 0.0
    %334 = vmatpush2.msra.mxu0 0.0
    %335 = vmatprep.subr.mxu0 0.0
    %336 = vmatpush2.msra.mxu0 0.0
    %337 = vmatprep.subr.mxu0 0.0
    %338 = vmatpush2.msra.mxu0 0.0
    %339 = vmatprep.subr.mxu0 0.0
    %340 = vmatpush2.msra.mxu0 0.0
    %341 = vmatprep.mubr.f32.mxu0 0.0
    %342 = vmatmul.mubr.f32.gmra.mxu0 %v274
    %v343 = vpop.f32.mrf.mxu0
    %v344 = vadd.f32 0.0, %v343
    %v345 = vpop.f32.mrf.mxu0
    %346 = vdwg.mxu0
    %v347 = vadd.f32 %v276, %v344
    %v348 = vtanh.pop %v347
    %s349 = scalar_lea.vmem [#allocation2], 16
    %v350 = vld [vmem:[%s349] sm:$0xff]
    %351 = vmatprep.subr.mxu0 0.0
    %352 = vmatpush1.msra.mxu0 %v201
    %353 = vmatprep.subr.mxu0 0.0
    %354 = vmatpush1.msra.mxu0 %v200
    %355 = vmatprep.subr.mxu0 0.0
    %356 = vmatpush1.msra.mxu0 %v199
    %357 = vmatprep.subr.mxu0 0.0
    %358 = vmatpush1.msra.mxu0 %v198
    %359 = vmatprep.subr.mxu0 0.0
    %360 = vmatpush1.msra.mxu0 %v197
    %361 = vmatprep.subr.mxu0 0.0
    %362 = vmatpush1.msra.mxu0 %v196
    %363 = vmatprep.subr.mxu0 0.0
    %364 = vmatpush1.msra.mxu0 %v195
    %365 = vmatprep.subr.mxu0 0.0
    %366 = vmatpush1.msra.mxu0 %v194
    %367 = vmatprep.subr.mxu0 0.0
    %368 = vmatpush1.msra.mxu0 %v193
    %369 = vmatprep.subr.mxu0 0.0
    %370 = vmatpush1.msra.mxu0 %v192
    %371 = vmatprep.subr.mxu0 0.0
    %372 = vmatpush1.msra.mxu0 %v191
    %373 = vmatprep.subr.mxu0 0.0
    %374 = vmatpush1.msra.mxu0 %v190
    %375 = vmatprep.subr.mxu0 0.0
    %376 = vmatpush1.msra.mxu0 %v189
    %377 = vmatprep.subr.mxu0 0.0
    %378 = vmatpush1.msra.mxu0 %v188
    %379 = vmatprep.subr.mxu0 0.0
    %380 = vmatpush1.msra.mxu0 %v187
    %381 = vmatprep.subr.mxu0 0.0
    %382 = vmatpush1.msra.mxu0 %v186
    %383 = vmatprep.subr.mxu0 0.0
    %384 = vmatpush2.msra.mxu0 0.0
    %385 = vmatprep.subr.mxu0 0.0
    %386 = vmatpush2.msra.mxu0 0.0
    %387 = vmatprep.subr.mxu0 0.0
    %388 = vmatpush2.msra.mxu0 0.0
    %389 = vmatprep.subr.mxu0 0.0
    %390 = vmatpush2.msra.mxu0 0.0
    %391 = vmatprep.subr.mxu0 0.0
    %392 = vmatpush2.msra.mxu0 0.0
    %393 = vmatprep.subr.mxu0 0.0
    %394 = vmatpush2.msra.mxu0 0.0
    %395 = vmatprep.subr.mxu0 0.0
    %396 = vmatpush2.msra.mxu0 0.0
    %397 = vmatprep.subr.mxu0 0.0
    %398 = vmatpush2.msra.mxu0 0.0
    %399 = vmatprep.subr.mxu0 0.0
    %400 = vmatpush2.msra.mxu0 0.0
    %401 = vmatprep.subr.mxu0 0.0
    %402 = vmatpush2.msra.mxu0 0.0
    %403 = vmatprep.subr.mxu0 0.0
    %404 = vmatpush2.msra.mxu0 0.0
    %405 = vmatprep.subr.mxu0 0.0
    %406 = vmatpush2.msra.mxu0 0.0
    %407 = vmatprep.subr.mxu0 0.0
    %408 = vmatpush2.msra.mxu0 0.0
    %409 = vmatprep.subr.mxu0 0.0
    %410 = vmatpush2.msra.mxu0 0.0
    %411 = vmatprep.subr.mxu0 0.0
    %412 = vmatpush2.msra.mxu0 0.0
    %413 = vmatprep.subr.mxu0 0.0
    %414 = vmatpush2.msra.mxu0 0.0
    %415 = vmatprep.mubr.f32.mxu0 0.0
    %416 = vmatmul.mubr.f32.gmra.mxu0 %v348
    %v417 = vpop.f32.mrf.mxu0
    %v418 = vadd.f32 0.0, %v417
    %v419 = vpop.f32.mrf.mxu0
    %420 = vdwg.mxu0
    %v421 = vadd.f32 %v350, %v418
    %v422 = vtanh.pop %v421
    %s423 = scalar_lea.vmem [#allocation2], 24
    %v424 = vld [vmem:[%s423] sm:$0xff]
    %425 = vmatprep.subr.mxu0 0.0
    %426 = vmatpush1.msra.mxu0 %v201
    %427 = vmatprep.subr.mxu0 0.0
    %428 = vmatpush1.msra.mxu0 %v200
    %429 = vmatprep.subr.mxu0 0.0
    %430 = vmatpush1.msra.mxu0 %v199
    %431 = vmatprep.subr.mxu0 0.0
    %432 = vmatpush1.msra.mxu0 %v198
    %433 = vmatprep.subr.mxu0 0.0
    %434 = vmatpush1.msra.mxu0 %v197
    %435 = vmatprep.subr.mxu0 0.0
    %436 = vmatpush1.msra.mxu0 %v196
    %437 = vmatprep.subr.mxu0 0.0
    %438 = vmatpush1.msra.mxu0 %v195
    %439 = vmatprep.subr.mxu0 0.0
    %440 = vmatpush1.msra.mxu0 %v194
    %441 = vmatprep.subr.mxu0 0.0
    %442 = vmatpush1.msra.mxu0 %v193
    %443 = vmatprep.subr.mxu0 0.0
    %444 = vmatpush1.msra.mxu0 %v192
    %445 = vmatprep.subr.mxu0 0.0
    %446 = vmatpush1.msra.mxu0 %v191
    %447 = vmatprep.subr.mxu0 0.0
    %448 = vmatpush1.msra.mxu0 %v190
    %449 = vmatprep.subr.mxu0 0.0
    %450 = vmatpush1.msra.mxu0 %v189
    %451 = vmatprep.subr.mxu0 0.0
    %452 = vmatpush1.msra.mxu0 %v188
    %453 = vmatprep.subr.mxu0 0.0
    %454 = vmatpush1.msra.mxu0 %v187
    %455 = vmatprep.subr.mxu0 0.0
    %456 = vmatpush1.msra.mxu0 %v186
    %457 = vmatprep.subr.mxu0 0.0
    %458 = vmatpush2.msra.mxu0 0.0
    %459 = vmatprep.subr.mxu0 0.0
    %460 = vmatpush2.msra.mxu0 0.0
    %461 = vmatprep.subr.mxu0 0.0
    %462 = vmatpush2.msra.mxu0 0.0
    %463 = vmatprep.subr.mxu0 0.0
    %464 = vmatpush2.msra.mxu0 0.0
    %465 = vmatprep.subr.mxu0 0.0
    %466 = vmatpush2.msra.mxu0 0.0
    %467 = vmatprep.subr.mxu0 0.0
    %468 = vmatpush2.msra.mxu0 0.0
    %469 = vmatprep.subr.mxu0 0.0
    %470 = vmatpush2.msra.mxu0 0.0
    %471 = vmatprep.subr.mxu0 0.0
    %472 = vmatpush2.msra.mxu0 0.0
    %473 = vmatprep.subr.mxu0 0.0
    %474 = vmatpush2.msra.mxu0 0.0
    %475 = vmatprep.subr.mxu0 0.0
    %476 = vmatpush2.msra.mxu0 0.0
    %477 = vmatprep.subr.mxu0 0.0
    %478 = vmatpush2.msra.mxu0 0.0
    %479 = vmatprep.subr.mxu0 0.0
    %480 = vmatpush2.msra.mxu0 0.0
    %481 = vmatprep.subr.mxu0 0.0
    %482 = vmatpush2.msra.mxu0 0.0
    %483 = vmatprep.subr.mxu0 0.0
    %484 = vmatpush2.msra.mxu0 0.0
    %485 = vmatprep.subr.mxu0 0.0
    %486 = vmatpush2.msra.mxu0 0.0
    %487 = vmatprep.subr.mxu0 0.0
    %488 = vmatpush2.msra.mxu0 0.0
    %489 = vmatprep.mubr.f32.mxu0 0.0
    %490 = vmatmul.mubr.f32.gmra.mxu0 %v422
    %v491 = vpop.f32.mrf.mxu0
    %v492 = vadd.f32 0.0, %v491
    %v493 = vpop.f32.mrf.mxu0
    %494 = vdwg.mxu0
    %v495 = vadd.f32 %v424, %v492
    %v496 = vtanh.pop %v495
    %s497 = scalar_lea.vmem [#allocation2], 32
    %v498 = vld [vmem:[%s497] sm:$0xff]
    %499 = vmatprep.subr.mxu0 0.0
    %500 = vmatpush1.msra.mxu0 %v201
    %501 = vmatprep.subr.mxu0 0.0
    %502 = vmatpush1.msra.mxu0 %v200
    %503 = vmatprep.subr.mxu0 0.0
    %504 = vmatpush1.msra.mxu0 %v199
    %505 = vmatprep.subr.mxu0 0.0
    %506 = vmatpush1.msra.mxu0 %v198
    %507 = vmatprep.subr.mxu0 0.0
    %508 = vmatpush1.msra.mxu0 %v197
    %509 = vmatprep.subr.mxu0 0.0
    %510 = vmatpush1.msra.mxu0 %v196
    %511 = vmatprep.subr.mxu0 0.0
    %512 = vmatpush1.msra.mxu0 %v195
    %513 = vmatprep.subr.mxu0 0.0
    %514 = vmatpush1.msra.mxu0 %v194
    %515 = vmatprep.subr.mxu0 0.0
    %516 = vmatpush1.msra.mxu0 %v193
    %517 = vmatprep.subr.mxu0 0.0
    %518 = vmatpush1.msra.mxu0 %v192
    %519 = vmatprep.subr.mxu0 0.0
    %520 = vmatpush1.msra.mxu0 %v191
    %521 = vmatprep.subr.mxu0 0.0
    %522 = vmatpush1.msra.mxu0 %v190
    %523 = vmatprep.subr.mxu0 0.0
    %524 = vmatpush1.msra.mxu0 %v189
    %525 = vmatprep.subr.mxu0 0.0
    %526 = vmatpush1.msra.mxu0 %v188
    %527 = vmatprep.subr.mxu0 0.0
    %528 = vmatpush1.msra.mxu0 %v187
    %529 = vmatprep.subr.mxu0 0.0
    %530 = vmatpush1.msra.mxu0 %v186
    %531 = vmatprep.subr.mxu0 0.0
    %532 = vmatpush2.msra.mxu0 0.0
    %533 = vmatprep.subr.mxu0 0.0
    %534 = vmatpush2.msra.mxu0 0.0
    %535 = vmatprep.subr.mxu0 0.0
    %536 = vmatpush2.msra.mxu0 0.0
    %537 = vmatprep.subr.mxu0 0.0
    %538 = vmatpush2.msra.mxu0 0.0
    %539 = vmatprep.subr.mxu0 0.0
    %540 = vmatpush2.msra.mxu0 0.0
    %541 = vmatprep.subr.mxu0 0.0
    %542 = vmatpush2.msra.mxu0 0.0
    %543 = vmatprep.subr.mxu0 0.0
    %544 = vmatpush2.msra.mxu0 0.0
    %545 = vmatprep.subr.mxu0 0.0
    %546 = vmatpush2.msra.mxu0 0.0
    %547 = vmatprep.subr.mxu0 0.0
    %548 = vmatpush2.msra.mxu0 0.0
    %549 = vmatprep.subr.mxu0 0.0
    %550 = vmatpush2.msra.mxu0 0.0
    %551 = vmatprep.subr.mxu0 0.0
    %552 = vmatpush2.msra.mxu0 0.0
    %553 = vmatprep.subr.mxu0 0.0
    %554 = vmatpush2.msra.mxu0 0.0
    %555 = vmatprep.subr.mxu0 0.0
    %556 = vmatpush2.msra.mxu0 0.0
    %557 = vmatprep.subr.mxu0 0.0
    %558 = vmatpush2.msra.mxu0 0.0
    %559 = vmatprep.subr.mxu0 0.0
    %560 = vmatpush2.msra.mxu0 0.0
    %561 = vmatprep.subr.mxu0 0.0
    %562 = vmatpush2.msra.mxu0 0.0
    %563 = vmatprep.mubr.f32.mxu0 0.0
    %564 = vmatmul.mubr.f32.gmra.mxu0 %v496
    %v565 = vpop.f32.mrf.mxu0
    %v566 = vadd.f32 0.0, %v565
    %v567 = vpop.f32.mrf.mxu0
    %568 = vdwg.mxu0
    %v569 = vadd.f32 %v498, %v566
    %v570 = vtanh.pop %v569
    %s571 = scalar_lea.vmem [#allocation2], 40
    %v572 = vld [vmem:[%s571] sm:$0xff]
    %573 = vmatprep.subr.mxu0 0.0
    %574 = vmatpush1.msra.mxu0 %v201
    %575 = vmatprep.subr.mxu0 0.0
    %576 = vmatpush1.msra.mxu0 %v200
    %577 = vmatprep.subr.mxu0 0.0
    %578 = vmatpush1.msra.mxu0 %v199
    %579 = vmatprep.subr.mxu0 0.0
    %580 = vmatpush1.msra.mxu0 %v198
    %581 = vmatprep.subr.mxu0 0.0
    %582 = vmatpush1.msra.mxu0 %v197
    %583 = vmatprep.subr.mxu0 0.0
    %584 = vmatpush1.msra.mxu0 %v196
    %585 = vmatprep.subr.mxu0 0.0
    %586 = vmatpush1.msra.mxu0 %v195
    %587 = vmatprep.subr.mxu0 0.0
    %588 = vmatpush1.msra.mxu0 %v194
    %589 = vmatprep.subr.mxu0 0.0
    %590 = vmatpush1.msra.mxu0 %v193
    %591 = vmatprep.subr.mxu0 0.0
    %592 = vmatpush1.msra.mxu0 %v192
    %593 = vmatprep.subr.mxu0 0.0
    %594 = vmatpush1.msra.mxu0 %v191
    %595 = vmatprep.subr.mxu0 0.0
    %596 = vmatpush1.msra.mxu0 %v190
    %597 = vmatprep.subr.mxu0 0.0
    %598 = vmatpush1.msra.mxu0 %v189
    %599 = vmatprep.subr.mxu0 0.0
    %600 = vmatpush1.msra.mxu0 %v188
    %601 = vmatprep.subr.mxu0 0.0
    %602 = vmatpush1.msra.mxu0 %v187
    %603 = vmatprep.subr.mxu0 0.0
    %604 = vmatpush1.msra.mxu0 %v186
    %605 = vmatprep.subr.mxu0 0.0
    %606 = vmatpush2.msra.mxu0 0.0
    %607 = vmatprep.subr.mxu0 0.0
    %608 = vmatpush2.msra.mxu0 0.0
    %609 = vmatprep.subr.mxu0 0.0
    %610 = vmatpush2.msra.mxu0 0.0
    %611 = vmatprep.subr.mxu0 0.0
    %612 = vmatpush2.msra.mxu0 0.0
    %613 = vmatprep.subr.mxu0 0.0
    %614 = vmatpush2.msra.mxu0 0.0
    %615 = vmatprep.subr.mxu0 0.0
    %616 = vmatpush2.msra.mxu0 0.0
    %617 = vmatprep.subr.mxu0 0.0
    %618 = vmatpush2.msra.mxu0 0.0
    %619 = vmatprep.subr.mxu0 0.0
    %620 = vmatpush2.msra.mxu0 0.0
    %621 = vmatprep.subr.mxu0 0.0
    %622 = vmatpush2.msra.mxu0 0.0
    %623 = vmatprep.subr.mxu0 0.0
    %624 = vmatpush2.msra.mxu0 0.0
    %625 = vmatprep.subr.mxu0 0.0
    %626 = vmatpush2.msra.mxu0 0.0
    %627 = vmatprep.subr.mxu0 0.0
    %628 = vmatpush2.msra.mxu0 0.0
    %629 = vmatprep.subr.mxu0 0.0
    %630 = vmatpush2.msra.mxu0 0.0
    %631 = vmatprep.subr.mxu0 0.0
    %632 = vmatpush2.msra.mxu0 0.0
    %633 = vmatprep.subr.mxu0 0.0
    %634 = vmatpush2.msra.mxu0 0.0
    %635 = vmatprep.subr.mxu0 0.0
    %636 = vmatpush2.msra.mxu0 0.0
    %637 = vmatprep.mubr.f32.mxu0 0.0
    %638 = vmatmul.mubr.f32.gmra.mxu0 %v570
    %v639 = vpop.f32.mrf.mxu0
    %v640 = vadd.f32 0.0, %v639
    %v641 = vpop.f32.mrf.mxu0
    %642 = vdwg.mxu0
    %v643 = vadd.f32 %v572, %v640
    %v644 = vtanh.pop %v643
    %s645 = scalar_lea.vmem [#allocation2], 48
    %v646 = vld [vmem:[%s645] sm:$0xff]
    %647 = vmatprep.subr.mxu0 0.0
    %648 = vmatpush1.msra.mxu0 %v201
    %649 = vmatprep.subr.mxu0 0.0
    %650 = vmatpush1.msra.mxu0 %v200
    %651 = vmatprep.subr.mxu0 0.0
    %652 = vmatpush1.msra.mxu0 %v199
    %653 = vmatprep.subr.mxu0 0.0
    %654 = vmatpush1.msra.mxu0 %v198
    %655 = vmatprep.subr.mxu0 0.0
    %656 = vmatpush1.msra.mxu0 %v197
    %657 = vmatprep.subr.mxu0 0.0
    %658 = vmatpush1.msra.mxu0 %v196
    %659 = vmatprep.subr.mxu0 0.0
    %660 = vmatpush1.msra.mxu0 %v195
    %661 = vmatprep.subr.mxu0 0.0
    %662 = vmatpush1.msra.mxu0 %v194
    %663 = vmatprep.subr.mxu0 0.0
    %664 = vmatpush1.msra.mxu0 %v193
    %665 = vmatprep.subr.mxu0 0.0
    %666 = vmatpush1.msra.mxu0 %v192
    %667 = vmatprep.subr.mxu0 0.0
    %668 = vmatpush1.msra.mxu0 %v191
    %669 = vmatprep.subr.mxu0 0.0
    %670 = vmatpush1.msra.mxu0 %v190
    %671 = vmatprep.subr.mxu0 0.0
    %672 = vmatpush1.msra.mxu0 %v189
    %673 = vmatprep.subr.mxu0 0.0
    %674 = vmatpush1.msra.mxu0 %v188
    %675 = vmatprep.subr.mxu0 0.0
    %676 = vmatpush1.msra.mxu0 %v187
    %677 = vmatprep.subr.mxu0 0.0
    %678 = vmatpush1.msra.mxu0 %v186
    %679 = vmatprep.subr.mxu0 0.0
    %680 = vmatpush2.msra.mxu0 0.0
    %681 = vmatprep.subr.mxu0 0.0
    %682 = vmatpush2.msra.mxu0 0.0
    %683 = vmatprep.subr.mxu0 0.0
    %684 = vmatpush2.msra.mxu0 0.0
    %685 = vmatprep.subr.mxu0 0.0
    %686 = vmatpush2.msra.mxu0 0.0
    %687 = vmatprep.subr.mxu0 0.0
    %688 = vmatpush2.msra.mxu0 0.0
    %689 = vmatprep.subr.mxu0 0.0
    %690 = vmatpush2.msra.mxu0 0.0
    %691 = vmatprep.subr.mxu0 0.0
    %692 = vmatpush2.msra.mxu0 0.0
    %693 = vmatprep.subr.mxu0 0.0
    %694 = vmatpush2.msra.mxu0 0.0
    %695 = vmatprep.subr.mxu0 0.0
    %696 = vmatpush2.msra.mxu0 0.0
    %697 = vmatprep.subr.mxu0 0.0
    %698 = vmatpush2.msra.mxu0 0.0
    %699 = vmatprep.subr.mxu0 0.0
    %700 = vmatpush2.msra.mxu0 0.0
    %701 = vmatprep.subr.mxu0 0.0
    %702 = vmatpush2.msra.mxu0 0.0
    %703 = vmatprep.subr.mxu0 0.0
    %704 = vmatpush2.msra.mxu0 0.0
    %705 = vmatprep.subr.mxu0 0.0
    %706 = vmatpush2.msra.mxu0 0.0
    %707 = vmatprep.subr.mxu0 0.0
    %708 = vmatpush2.msra.mxu0 0.0
    %709 = vmatprep.subr.mxu0 0.0
    %710 = vmatpush2.msra.mxu0 0.0
    %711 = vmatprep.mubr.f32.mxu0 0.0
    %712 = vmatmul.mubr.f32.gmra.mxu0 %v644
    %v713 = vpop.f32.mrf.mxu0
    %v714 = vadd.f32 0.0, %v713
    %v715 = vpop.f32.mrf.mxu0
    %716 = vdwg.mxu0
    %v717 = vadd.f32 %v646, %v714
    %v718 = vtanh.pop %v717
    %s719 = scalar_lea.vmem [#allocation2], 56
    %v720 = vld [vmem:[%s719] sm:$0xff]
    %721 = vmatprep.subr.mxu0 0.0
    %722 = vmatpush1.msra.mxu0 %v201
    %723 = vmatprep.subr.mxu0 0.0
    %724 = vmatpush1.msra.mxu0 %v200
    %725 = vmatprep.subr.mxu0 0.0
    %726 = vmatpush1.msra.mxu0 %v199
    %727 = vmatprep.subr.mxu0 0.0
    %728 = vmatpush1.msra.mxu0 %v198
    %729 = vmatprep.subr.mxu0 0.0
    %730 = vmatpush1.msra.mxu0 %v197
    %731 = vmatprep.subr.mxu0 0.0
    %732 = vmatpush1.msra.mxu0 %v196
    %733 = vmatprep.subr.mxu0 0.0
    %734 = vmatpush1.msra.mxu0 %v195
    %735 = vmatprep.subr.mxu0 0.0
    %736 = vmatpush1.msra.mxu0 %v194
    %737 = vmatprep.subr.mxu0 0.0
    %738 = vmatpush1.msra.mxu0 %v193
    %739 = vmatprep.subr.mxu0 0.0
    %740 = vmatpush1.msra.mxu0 %v192
    %741 = vmatprep.subr.mxu0 0.0
    %742 = vmatpush1.msra.mxu0 %v191
    %743 = vmatprep.subr.mxu0 0.0
    %744 = vmatpush1.msra.mxu0 %v190
    %745 = vmatprep.subr.mxu0 0.0
    %746 = vmatpush1.msra.mxu0 %v189
    %747 = vmatprep.subr.mxu0 0.0
    %748 = vmatpush1.msra.mxu0 %v188
    %749 = vmatprep.subr.mxu0 0.0
    %750 = vmatpush1.msra.mxu0 %v187
    %751 = vmatprep.subr.mxu0 0.0
    %752 = vmatpush1.msra.mxu0 %v186
    %753 = vmatprep.subr.mxu0 0.0
    %754 = vmatpush2.msra.mxu0 0.0
    %755 = vmatprep.subr.mxu0 0.0
    %756 = vmatpush2.msra.mxu0 0.0
    %757 = vmatprep.subr.mxu0 0.0
    %758 = vmatpush2.msra.mxu0 0.0
    %759 = vmatprep.subr.mxu0 0.0
    %760 = vmatpush2.msra.mxu0 0.0
    %761 = vmatprep.subr.mxu0 0.0
    %762 = vmatpush2.msra.mxu0 0.0
    %763 = vmatprep.subr.mxu0 0.0
    %764 = vmatpush2.msra.mxu0 0.0
    %765 = vmatprep.subr.mxu0 0.0
    %766 = vmatpush2.msra.mxu0 0.0
    %767 = vmatprep.subr.mxu0 0.0
    %768 = vmatpush2.msra.mxu0 0.0
    %769 = vmatprep.subr.mxu0 0.0
    %770 = vmatpush2.msra.mxu0 0.0
    %771 = vmatprep.subr.mxu0 0.0
    %772 = vmatpush2.msra.mxu0 0.0
    %773 = vmatprep.subr.mxu0 0.0
    %774 = vmatpush2.msra.mxu0 0.0
    %775 = vmatprep.subr.mxu0 0.0
    %776 = vmatpush2.msra.mxu0 0.0
    %777 = vmatprep.subr.mxu0 0.0
    %778 = vmatpush2.msra.mxu0 0.0
    %779 = vmatprep.subr.mxu0 0.0
    %780 = vmatpush2.msra.mxu0 0.0
    %781 = vmatprep.subr.mxu0 0.0
    %782 = vmatpush2.msra.mxu0 0.0
    %783 = vmatprep.subr.mxu0 0.0
    %784 = vmatpush2.msra.mxu0 0.0
    %785 = vmatprep.mubr.f32.mxu0 0.0
    %786 = vmatmul.mubr.f32.gmra.mxu0 %v718
    %v787 = vpop.f32.mrf.mxu0
    %v788 = vadd.f32 0.0, %v787
    %v789 = vpop.f32.mrf.mxu0
    %790 = vdwg.mxu0
    %v791 = vadd.f32 %v720, %v788
    %v792 = vtanh.pop %v791
    %v793 = vld [vmem:[%s4] sm:$0x1]
    %v795 = vlaneseq
    %v796 = vshrl.u32 %v795, 7
    %v797 = vsub.s32 0, %v796
    %v798 = vrot.slane %v793, %v797
    %v800 = vmul.f32 %v792, %v798
    %801 = vadd.xlane.f32.xlu0 %v800
    %v802 = vpop.xlane.xlu0 %801
    %s803 = sld [smem:[#allocation3]]
    %v804 = vstv %s803
    %v805 = vadd.f32 %v802, %v804
    %vm806 = vcmask 7168
    %807 = vst.msk [vmem:[%s6] sm:$0xff] %vm806, %v805
  $region29: #{rnn_forward.1} parent=0 // pred_fallthru
    _
  // Predicated region
  $region30: #{rnn_forward.1} parent=0 // pred_check
    _
  $region31: #{rnn_forward.1} parent=0 // pred_check_branch
    %809 = sbr.rel (0) target = $region33
  $region32: #{rnn_forward.1} parent=0 // pred_region
    _
  $region33: #{rnn_forward.1} parent=0 // pred_fallthru
    _
  // Predicated region
  $region34: #{rnn_forward.1} parent=0 // pred_check
    _
  $region35: #{rnn_forward.1} parent=0 // pred_check_branch
    %811 = sbr.rel (0) target = $region37
  $region36: #{rnn_forward.1} parent=0 // pred_region
    _
  $region37: #{rnn_forward.1} parent=0 // pred_fallthru
    _

</llo_original>
